<compile_context>
chip_gen: v7x
topology: tpu7x:2x2x1
jax: 0.10.0
libtpu: 0.0.40
codegen_flags: <defaults>
</compile_context>

<pallas_src>
import functools
import numpy as np
import jax
import jax.numpy as jnp
from jax import lax
from jax.experimental import pallas as pl
from jax.experimental.pallas import tpu as pltpu


# ---------------------------------------------------------------------------
# Cube-map padding index precompute (numpy, deterministic, done once).
# ---------------------------------------------------------------------------
def _face_to_dir(face, u, v):
    o = np.ones_like(u)
    if face == 0:   # +X
        return o, -v, -u
    if face == 1:   # -X
        return -o, -v, u
    if face == 2:   # +Y
        return u, o, v
    if face == 3:   # -Y
        return u, -o, -v
    if face == 4:   # +Z
        return u, -v, o
    return -u, -v, -o  # 5: -Z


def _dir_to_face_uv(x, y, z):
    ax, ay, az = np.abs(x), np.abs(y), np.abs(z)
    eps = 1e-12
    is_x = (ax >= ay) & (ax >= az)
    is_y = (~is_x) & (ay >= az)
    face = np.where(is_x, np.where(x > 0, 0, 1),
                    np.where(is_y, np.where(y > 0, 2, 3),
                             np.where(z > 0, 4, 5))).astype(np.int32)
    m = np.where(is_x, ax, np.where(is_y, ay, az)) + eps
    u = np.where(face == 0, -z, 0.0)
    u = np.where(face == 1, z, u)
    u = np.where((face == 2) | (face == 3) | (face == 4), x, u)
    u = np.where(face == 5, -x, u)
    v = np.where(face == 2, z, np.where(face == 3, -z, -y))
    return face, u / m, v / m


def get_padding_indices_pad_only(channels, width, padding):
    # TODO(synk): get_normalized_grid_cubemap / samples_from_cubemap were not
    # provided; an equivalent deterministic nearest-neighbor cube-map adjacency
    # (standard OpenGL face convention) is used to build the same index tables.
    W, p = width, padding
    Wp = W + 2 * p
    ii, jj = np.meshgrid(np.arange(Wp), np.arange(Wp), indexing='ij')
    u = ((jj - p) + 0.5) / W * 2.0 - 1.0
    v = ((ii - p) + 0.5) / W * 2.0 - 1.0
    face_idx = np.zeros((6, Wp, Wp), np.int32)
    spat_idx = np.zeros((6, Wp, Wp), np.int32)
    for f in range(6):
        x, y, z = _face_to_dir(f, u, v)
        sf, su, sv = _dir_to_face_uv(x, y, z)
        sj = np.clip(np.floor((su + 1.0) * 0.5 * W), 0, W - 1).astype(np.int32)
        si = np.clip(np.floor((sv + 1.0) * 0.5 * W), 0, W - 1).astype(np.int32)
        face_idx[f] = sf
        spat_idx[f] = si * W + sj
    pixel_idx = spat_idx[:, None] + (np.arange(channels, dtype=np.int32) * W * W)[None, :, None, None]
    pixel_idx_tb = np.concatenate([pixel_idx[:, :, :p, :], pixel_idx[:, :, Wp - p:, :]], axis=2)
    pixel_idx_lr = np.concatenate([pixel_idx[:, :, p:Wp - p, :p], pixel_idx[:, :, p:Wp - p, Wp - p:]], axis=3)
    face_idx_tb = np.concatenate([face_idx[:, :p, :], face_idx[:, Wp - p:, :]], axis=1)
    face_idx_lr = np.concatenate([face_idx[:, p:Wp - p, :p], face_idx[:, p:Wp - p, Wp - p:]], axis=2)
    return (pixel_idx_tb.astype(np.int32), pixel_idx_lr.astype(np.int32),
            face_idx_tb.astype(np.int32), face_idx_lr.astype(np.int32))


# ---------------------------------------------------------------------------
# Sparse cube padding (glue: gathers + masks, mirrors SparseIdxCubePadImproved).
# ---------------------------------------------------------------------------
def sparse_cube_pad(cube, to_process, batch_size, pad_tables, pad_width):
    pixel_idx_tb, pixel_idx_lr, face_idx_tb, face_idx_lr = pad_tables
    k, c, w, _ = cube.shape
    p = pad_width
    cww = c * w * w

    inv = -jnp.ones((6 * batch_size,), jnp.int32)
    inv = inv.at[to_process].set(jnp.arange(k, dtype=jnp.int32))
    batch_off = 6 * jnp.arange(batch_size, dtype=jnp.int32).reshape(-1, 1, 1, 1)
    flat = cube.reshape(-1)

    def build(face_tab, pix_tab):
        f = face_tab[None] + batch_off                      # (B, 6, a, b)
        f = f.reshape((6 * batch_size,) + face_tab.shape[1:])[to_process]
        f = inv[f]                                          # (k, a, b), -1 if absent
        px = pix_tab[to_process % 6]                        # (k, c, a, b)
        idx = f[:, None, :, :] * cww + px
        mask = idx >= 0
        idx = jnp.maximum(idx, 0)
        return jnp.where(mask, jnp.take(flat, idx), 0.0)

    pad_tb = build(face_idx_tb, pixel_idx_tb)               # (k, c, 2p, w+2p)
    pad_lr = build(face_idx_lr, pixel_idx_lr)               # (k, c, w, 2p)

    padded = jnp.concatenate([pad_lr[:, :, :, :p], cube, pad_lr[:, :, :, p:]], axis=3)
    padded = jnp.concatenate([pad_tb[:, :, :p, :], padded, pad_tb[:, :, p:, :]], axis=2)
    return padded


# ---------------------------------------------------------------------------
# Pallas conv kernel: one lane-dense MXU matmul per grid step.
#   Wb (Cout, R+1) @ patches (R+1, FB*Ho*Wo) -> (Cout, FB*Ho*Wo)
# Bias is folded into the contraction via the constant-1 patch row.
# ---------------------------------------------------------------------------
def _conv_kernel(p_ref, w_ref, o_ref):
    o_ref[...] = jnp.dot(w_ref[...], p_ref[...],
                         preferred_element_type=jnp.float32).astype(o_ref.dtype)


def _tensorcores_per_chip():
    # v7x has 2 TensorCores per chip; v5e/v6e have 1.
    try:
        kind = jax.devices()[0].device_kind.lower()
    except Exception:
        return 1
    return 2 if ("v7" in kind or "7x" in kind) else 1


def conv2d_pallas(patches_aug, w_aug, out_dtype, nw):
    """patches_aug: (R+1, K*NW) bf16; w_aug: (Cout, R+1) bf16; nw = Ho*Wo."""
    Rb, Ntot = patches_aug.shape
    Cout = w_aug.shape[0]
    K = Ntot // nw

    # Grid sizing: one step (whole problem resident) on single-TC chips; two
    # "parallel" steps on v7x.  Pad the face count so the steps split evenly
    # (never degenerate to per-face steps on odd K).
    n_cores = _tensorcores_per_chip()
    n_steps = n_cores if (n_cores > 1 and K >= 2 and nw % 128 == 0) else 1
    K_pad = ((K + n_steps - 1) // n_steps) * n_steps
    if K_pad != K:
        patches_aug = jnp.pad(patches_aug, ((0, 0), (0, (K_pad - K) * nw)))
    fb = K_pad // n_steps
    block_n = fb * nw

    in_itemsize = jnp.dtype(patches_aug.dtype).itemsize
    out_itemsize = jnp.dtype(out_dtype).itemsize
    cost = pl.CostEstimate(
        flops=2 * Cout * Rb * K_pad * nw,
        transcendentals=0,
        bytes_accessed=(patches_aug.size + w_aug.size) * in_itemsize
        + Cout * K_pad * nw * out_itemsize,
    )
    out = pl.pallas_call(
        _conv_kernel,
        out_shape=jax.ShapeDtypeStruct((Cout, K_pad * nw), out_dtype),
        grid_spec=pltpu.PrefetchScalarGridSpec(
            num_scalar_prefetch=0,
            grid=(n_steps,),
            in_specs=[
                pl.BlockSpec((Rb, block_n), lambda i: (0, i)),
                pl.BlockSpec((Cout, Rb), lambda i: (0, 0)),   # DMA'd once (constant map)
            ],
            out_specs=pl.BlockSpec((Cout, block_n), lambda i: (0, i)),
        ),
        compiler_params=pltpu.CompilerParams(dimension_semantics=("parallel",)),
        cost_estimate=cost,
    )(patches_aug, w_aug)
    return out[:, :K * nw]


# ---------------------------------------------------------------------------
# SparseCubeConv2d forward (NCHW in, NCHW out).
# ---------------------------------------------------------------------------
def sparse_cube_conv2d(x_nchw, to_process, batch_size, weight_oihw, bias, padding, pad_tables):
    if padding != 0:
        x_nchw = sparse_cube_pad(x_nchw, to_process, batch_size, pad_tables, padding)
    K, Cin, Hp, Wp = x_nchw.shape
    Cout, _, KH, KW = weight_oihw.shape
    Ho, Wo = Hp - KH + 1, Wp - KW + 1
    R = Cin * KH * KW
    NW = Ho * Wo

    if K == 0:
        return jnp.zeros((0, Cout, Ho, Wo), x_nchw.dtype), to_process, batch_size

    # im2col (wrapper / XLA glue), contraction ordered (cin, kh, kw) to match
    # weight_oihw.reshape(Cout, -1); fused N axis = (face, out-pixel).
    cols = [x_nchw[:, :, kh:kh + Ho, kw:kw + Wo] for kh in range(KH) for kw in range(KW)]
    patches = jnp.stack(cols, axis=2).reshape(K, R, NW)          # (K, R, NW)
    patches = jnp.transpose(patches, (1, 0, 2)).reshape(R, K * NW)

    # Fold bias into the contraction: constant-1 row + bias column.
    ones_row = jnp.ones((1, K * NW), patches.dtype)
    patches_aug = jnp.concatenate([patches, ones_row], axis=0).astype(jnp.bfloat16)
    w_aug = jnp.concatenate(
        [weight_oihw.reshape(Cout, R), bias.reshape(Cout, 1)], axis=1
    ).astype(jnp.bfloat16)

    out = conv2d_pallas(patches_aug, w_aug, jnp.float32, NW)     # (Cout, K*NW)
    out = out.reshape(Cout, K, Ho, Wo).transpose(1, 0, 2, 3)     # (K, Cout, Ho, Wo)
    return out.astype(x_nchw.dtype), to_process, batch_size


if __name__ == "__main__":
    key = jax.random.PRNGKey(0)
    batch_size = 2
    Cin, Cout, W, ksz, pad = 4, 8, 16, 3, 1
    to_process = jnp.array([0, 2, 3, 5, 7, 10], dtype=jnp.int32)   # k of the 6*B cube faces
    k = int(to_process.shape[0])

    kx, kwgt, kb = jax.random.split(key, 3)
    x = jax.random.normal(kx, (k, Cin, W, W), jnp.float32)
    fan_in = Cin * ksz * ksz
    bound = 1.0 / np.sqrt(fan_in)
    weight = jax.random.uniform(kwgt, (Cout, Cin, ksz, ksz), jnp.float32, -bound, bound)
    bias = jax.random.uniform(kb, (Cout,), jnp.float32, -bound, bound)

    pad_tables = tuple(jnp.asarray(t) for t in get_padding_indices_pad_only(Cin, W, pad))

    out, tp, bs = sparse_cube_conv2d(x, to_process, batch_size, weight, bias, pad, pad_tables)
    out = jax.block_until_ready(out)
    assert out.shape == (k, Cout, W, W)

    # Sanity check the Pallas conv against XLA's conv on the same padded input,
    # using identically bf16-cast operands (f32 accumulation) so numerics match.
    padded = sparse_cube_pad(x, to_process, batch_size, pad_tables, pad)
    ref = lax.conv_general_dilated(
        padded.astype(jnp.bfloat16), weight.astype(jnp.bfloat16), (1, 1), 'VALID',
        dimension_numbers=('NCHW', 'OIHW', 'NCHW'),
        preferred_element_type=jnp.float32)
    ref = ref + bias.astype(jnp.bfloat16).astype(jnp.float32).reshape(1, -1, 1, 1)
    assert jnp.allclose(out, ref, rtol=2e-3, atol=2e-3), float(jnp.max(jnp.abs(out - ref)))

    # Coarse check against the pure-f32 reference (bf16 operand rounding only).
    ref_f32 = lax.conv_general_dilated(
        padded, weight, (1, 1), 'VALID',
        dimension_numbers=('NCHW', 'OIHW', 'NCHW')) + bias.reshape(1, -1, 1, 1)
    assert jnp.allclose(out, ref_f32, rtol=5e-2, atol=5e-2)

    print("KERNEL_OK")
</pallas_src>

<mosaic_0001>
module attributes {stable_mosaic.version = 11 : i64} {
  func.func @_conv_kernel(%arg0: i32, %arg1: memref<37x1536xbf16, #tpu.memory_space<vmem>>, %arg2: memref<8x37xbf16, #tpu.memory_space<vmem>>, %arg3: memref<8x1536xf32, #tpu.memory_space<vmem>>) attributes {dimension_semantics = [#tpu.dimension_semantics<parallel>], iteration_bounds = array<i64: 1>, scalar_prefetch = 0 : i64, scratch_operands = 0 : i64, tpu.core_type = #tpu.core_type<tc>, window_params = [{transform_indices = @transform_0, window_bounds = array<i64: 37, 1536>}, {pipeline_mode = #tpu.pipeline_mode<synchronous>, transform_indices = @transform_1, window_bounds = array<i64: 8, 37>}, {transform_indices = @transform_2, window_bounds = array<i64: 8, 1536>}]} {
    %c0 = arith.constant 0 : index
    %c0_0 = arith.constant 0 : index
    %0 = vector.load %arg2[%c0, %c0_0] : memref<8x37xbf16, #tpu.memory_space<vmem>>, vector<8x37xbf16>
    %c0_1 = arith.constant 0 : index
    %c0_2 = arith.constant 0 : index
    %1 = vector.load %arg1[%c0_1, %c0_2] : memref<37x1536xbf16, #tpu.memory_space<vmem>>, vector<37x1536xbf16>
    %cst = arith.constant dense<0.000000e+00> : vector<8x1536xf32>
    %2 = tpu.matmul %0, %1, %cst {dimension_numbers = #tpu.dot_dimension_numbers<[1], [0], [0], [1], [0, 0, 1, 1], [], []>} : vector<8x37xbf16>, vector<37x1536xbf16>, vector<8x1536xf32> -> vector<8x1536xf32>
    %c0_3 = arith.constant 0 : index
    %c0_4 = arith.constant 0 : index
    %3 = vector.load %arg3[%c0_3, %c0_4] : memref<8x1536xf32, #tpu.memory_space<vmem>>, vector<8x1536xf32>
    tpu.vector_store %arg3[%c0_3, %c0_4], %2 {strides = array<i32>} : memref<8x1536xf32, #tpu.memory_space<vmem>>, vector<8x1536xf32>,
    return
  }
  func.func @transform_0(%arg0: i32) -> (i32, i32) {
    %c0_i32 = arith.constant 0 : i32
    %c0_i32_0 = arith.constant 0 : i32
    return %c0_i32, %arg0 : i32, i32
  }
  func.func @transform_1(%arg0: i32) -> (i32, i32) {
    %c0_i32 = arith.constant 0 : i32
    %c0_i32_0 = arith.constant 0 : i32
    %c0_i32_1 = arith.constant 0 : i32
    return %c0_i32, %c0_i32_0 : i32, i32
  }
  func.func @transform_2(%arg0: i32) -> (i32, i32) {
    %c0_i32 = arith.constant 0 : i32
    %c0_i32_0 = arith.constant 0 : i32
    return %c0_i32, %arg0 : i32, i32
  }
}

</mosaic_0001>

<llo_original>
// kernel: tpu_custom_call.1
$region0: #{tpu_custom_call.1}
  #allocation0 [shape = 'u32[]', space=smem, size = 0x4, offset = 0x4, fixed_abs, tag = 'smem constant byte address 0x4 - core index']
  #allocation1 [shape = 'u32[144,128]{1,0:T(1,128)}', space=vmem, size = 0x12000, scoped, tag = 'internal scratch']
  %s0 = inlined_call_operand.hbm [shape: bf16[37,1536], index: 0, kind: input, shape index: {}]
  %s1 = inlined_call_operand.hbm [shape: bf16[8,37], index: 1, kind: input, shape index: {}]
  %s2 = inlined_call_operand.hbm [shape: f32[8,1536], index: 2, kind: output, shape index: {}]
  %s3 = sld [smem:[#allocation0]]
  $region26: #{tpu_custom_call.1} parent=0
    _
  %s5 = ssub.s32 1, %s3
  %s6 = scalar_select 0, %s5, %s3
  $region1: #{tpu_custom_call.1} parent=0
    #allocation2 [shape = 'u8[122880]{0}', space=vmem, size = 0x1e000, scoped, tag = 'input window, operand 0, single buffered']
    #allocation3 [shape = 's32[1]{0}', space=sflag, size = 0x4, scoped, tag = 'scoped memory for tpu_custom_call.1']
    #allocation4 [shape = 's32[1]{0}', space=sflag, size = 0x4, scoped, tag = 'scoped memory for tpu_custom_call.1']
    #allocation5 [shape = 'u8[2048]{0}', space=vmem, size = 0x800, scoped, tag = 'input window, operand 1, single buffered']
    #allocation6 [shape = 's32[1]{0}', space=sflag, size = 0x4, scoped, tag = 'scoped memory for tpu_custom_call.1']
    #allocation7 [shape = 'u8[49152]{0}', space=vmem, size = 0xc000, scoped, tag = 'output window, operand 0, single buffered']
    %7 = vsyncpa [#allocation3], 0
    %8 = vsyncpa [#allocation6], 0
    %9 = vsyncpa [#allocation4], 0
    // Predicated region
    $region2: #{tpu_custom_call.1} parent=1 // pred_check
      _
    $region3: #{tpu_custom_call.1} parent=1 // pred_check_branch
      %11 = sbr.rel (0) target = $region5
    $region4: #{tpu_custom_call.1} parent=1 // pred_region
      %s13 = ssub.s32 3840, 3840
      %14 = vsyncadd [#allocation3], %s13
      %s15 = sshll.u32 [#allocation2], 4
      %s16 = int_to_ptr.vmem [resolvable:$true] %s15
      %21 = dma.hbm_to_vmem [thread:$0]  %s0, 3840, %s16, [#allocation3], 768, 768, 48
    $region5: #{tpu_custom_call.1} parent=1 // pred_fallthru
      _
    // Predicated region
    $region6: #{tpu_custom_call.1} parent=1 // pred_check
      _
    $region7: #{tpu_custom_call.1} parent=1 // pred_check_branch
      %23 = sbr.rel (0) target = $region9
    $region8: #{tpu_custom_call.1} parent=1 // pred_region
      %s25 = ssub.s32 64, 64
      %26 = vsyncadd [#allocation6], %s25
      %s28 = sshll.u32 [#allocation5], 4
      %s29 = int_to_ptr.vmem [resolvable:$true] %s28
      %31 = dma.hbm_to_vmem [thread:$0]  %s1, 64, %s29, [#allocation6]
    $region9: #{tpu_custom_call.1} parent=1 // pred_fallthru
      _
    // Predicated region
    $region10: #{tpu_custom_call.1} parent=1 // pred_check
      _
    $region11: #{tpu_custom_call.1} parent=1 // pred_check_branch
      %33 = sbr.rel (0) target = $region13
    $region12: #{tpu_custom_call.1} parent=1 // pred_region
      %34 = dma.done [#allocation3], 3840
    $region13: #{tpu_custom_call.1} parent=1 // pred_fallthru
      _
    // Predicated region
    $region14: #{tpu_custom_call.1} parent=1 // pred_check
      _
    $region15: #{tpu_custom_call.1} parent=1 // pred_check_branch
      %36 = sbr.rel (0) target = $region17
    $region16: #{tpu_custom_call.1} parent=1 // pred_region
      %37 = dma.done [#allocation6], 64
    $region17: #{tpu_custom_call.1} parent=1 // pred_fallthru
      _
    %v39 = vld [vmem:[#allocation5] sm:$0xf]
    %v40 = vld [vmem:[#allocation2] sm:$0xff]
    %v41 = vld [vmem:[#allocation2 + $0x8] sm:$0xff]
    %v42 = vld [vmem:[#allocation2 + $0x10] sm:$0xff]
    %v43 = vld [vmem:[#allocation2 + $0x18] sm:$0xff]
    %v44 = vld [vmem:[#allocation2 + $0x20] sm:$0xff]
    %v45 = vld [vmem:[#allocation2 + $0x28] sm:$0xff]
    %v46 = vld [vmem:[#allocation2 + $0x30] sm:$0xff]
    %v47 = vld [vmem:[#allocation2 + $0x38] sm:$0xff]
    %v48 = vld [vmem:[#allocation2 + $0x40] sm:$0xff]
    %v49 = vld [vmem:[#allocation2 + $0x48] sm:$0xff]
    %v50 = vld [vmem:[#allocation2 + $0x50] sm:$0xff]
    %v51 = vld [vmem:[#allocation2 + $0x58] sm:$0xff]
    %v52 = vld [vmem:[#allocation2 + $0x60] sm:$0xff]
    %v53 = vld [vmem:[#allocation2 + $0x68] sm:$0xff]
    %v54 = vld [vmem:[#allocation2 + $0x70] sm:$0xff]
    %v55 = vld [vmem:[#allocation2 + $0x78] sm:$0xff]
    %v56 = vld [vmem:[#allocation2 + $0x80] sm:$0xff]
    %v57 = vld [vmem:[#allocation2 + $0x88] sm:$0xff]
    %v58 = vld [vmem:[#allocation2 + $0x90] sm:$0xff]
    %v59 = vld [vmem:[#allocation2 + $0x98] sm:$0xff]
    %v60 = vld [vmem:[#allocation2 + $0xa0] sm:$0xff]
    %v61 = vld [vmem:[#allocation2 + $0xa8] sm:$0xff]
    %v62 = vld [vmem:[#allocation2 + $0xb0] sm:$0xff]
    %v63 = vld [vmem:[#allocation2 + $0xb8] sm:$0xff]
    %v64 = vld [vmem:[#allocation2 + $0xc0] sm:$0x77]
    %v65 = vld [vmem:[#allocation2 + $0xc8] sm:$0x77]
    %v66 = vld [vmem:[#allocation2 + $0xd0] sm:$0x77]
    %v67 = vld [vmem:[#allocation2 + $0xd8] sm:$0x77]
    %v68 = vld [vmem:[#allocation2 + $0xe0] sm:$0x77]
    %v69 = vld [vmem:[#allocation2 + $0xe8] sm:$0x77]
    %v100 = vunpack.c.l.b16 %v40
    %v101 = vunpack.c.h.b16 %v40
    %v102 = vunpack.c.l.b16 %v41
    %v103 = vunpack.c.h.b16 %v41
    %v104 = vunpack.c.l.b16 %v42
    %v105 = vunpack.c.h.b16 %v42
    %v106 = vunpack.c.l.b16 %v43
    %v107 = vunpack.c.h.b16 %v43
    %v108 = vunpack.c.l.b16 %v44
    %v109 = vunpack.c.h.b16 %v44
    %v110 = vunpack.c.l.b16 %v45
    %v111 = vunpack.c.h.b16 %v45
    %v112 = vunpack.c.l.b16 %v46
    %v113 = vunpack.c.h.b16 %v46
    %v114 = vunpack.c.l.b16 %v47
    %v115 = vunpack.c.h.b16 %v47
    %v116 = vunpack.c.l.b16 %v48
    %v117 = vunpack.c.h.b16 %v48
    %v118 = vunpack.c.l.b16 %v49
    %v119 = vunpack.c.h.b16 %v49
    %v120 = vunpack.c.l.b16 %v50
    %v121 = vunpack.c.h.b16 %v50
    %v122 = vunpack.c.l.b16 %v51
    %v123 = vunpack.c.h.b16 %v51
    %v124 = vunpack.c.l.b16 %v52
    %v125 = vunpack.c.h.b16 %v52
    %v126 = vunpack.c.l.b16 %v53
    %v127 = vunpack.c.h.b16 %v53
    %v128 = vunpack.c.l.b16 %v54
    %v129 = vunpack.c.h.b16 %v54
    %v130 = vunpack.c.l.b16 %v55
    %v131 = vunpack.c.h.b16 %v55
    %v132 = vunpack.c.l.b16 %v56
    %v133 = vunpack.c.h.b16 %v56
    %v134 = vunpack.c.l.b16 %v57
    %v135 = vunpack.c.h.b16 %v57
    %v136 = vunpack.c.l.b16 %v58
    %v137 = vunpack.c.h.b16 %v58
    %v138 = vunpack.c.l.b16 %v59
    %v139 = vunpack.c.h.b16 %v59
    %v140 = vunpack.c.l.b16 %v60
    %v141 = vunpack.c.h.b16 %v60
    %v142 = vunpack.c.l.b16 %v61
    %v143 = vunpack.c.h.b16 %v61
    %v144 = vunpack.c.l.b16 %v62
    %v145 = vunpack.c.h.b16 %v62
    %v146 = vunpack.c.l.b16 %v63
    %v147 = vunpack.c.h.b16 %v63
    %v148 = vunpack.c.l.b16 %v64
    %v149 = vunpack.c.h.b16 %v64
    %v150 = vunpack.c.l.b16 %v65
    %v151 = vunpack.c.h.b16 %v65
    %v152 = vunpack.c.l.b16 %v66
    %v153 = vunpack.c.h.b16 %v66
    %v154 = vunpack.c.l.b16 %v67
    %v155 = vunpack.c.h.b16 %v67
    %v156 = vunpack.c.l.b16 %v68
    %v157 = vunpack.c.h.b16 %v68
    %v158 = vunpack.c.l.b16 %v69
    %v159 = vunpack.c.h.b16 %v69
    %v160 = vpack.c.b16 %v112, %v100
    %v161 = vpack.c.b16 %v113, %v101
    %v162 = vpack.c.b16 %v114, %v102
    %v163 = vpack.c.b16 %v115, %v103
    %v164 = vpack.c.b16 %v116, %v104
    %v165 = vpack.c.b16 %v117, %v105
    %v166 = vpack.c.b16 %v118, %v106
    %v167 = vpack.c.b16 %v119, %v107
    %v168 = vpack.c.b16 %v120, %v108
    %v169 = vpack.c.b16 %v121, %v109
    %v170 = vpack.c.b16 %v122, %v110
    %v171 = vpack.c.b16 %v123, %v111
    %v172 = vpack.c.b16 %v136, %v124
    %v173 = vpack.c.b16 %v137, %v125
    %v174 = vpack.c.b16 %v138, %v126
    %v175 = vpack.c.b16 %v139, %v127
    %v176 = vpack.c.b16 %v140, %v128
    %v177 = vpack.c.b16 %v141, %v129
    %v178 = vpack.c.b16 %v142, %v130
    %v179 = vpack.c.b16 %v143, %v131
    %v180 = vpack.c.b16 %v144, %v132
    %v181 = vpack.c.b16 %v145, %v133
    %v182 = vpack.c.b16 %v146, %v134
    %v183 = vpack.c.b16 %v147, %v135
    %v184 = vpack.c.b16 %v148, %v148
    %v185 = vpack.c.b16 %v149, %v149
    %v186 = vpack.c.b16 %v150, %v150
    %v187 = vpack.c.b16 %v151, %v151
    %v188 = vpack.c.b16 %v152, %v152
    %v189 = vpack.c.b16 %v153, %v153
    %v190 = vpack.c.b16 %v154, %v154
    %v191 = vpack.c.b16 %v155, %v155
    %v192 = vpack.c.b16 %v156, %v156
    %v193 = vpack.c.b16 %v157, %v157
    %v194 = vpack.c.b16 %v158, %v158
    %v195 = vpack.c.b16 %v159, %v159
    %vm220 = vcmask 302080
    %v222 = vsel %vm220, %v39, 0
    %vm224 = vcmask 1041408
    %vm225 = vcmask 1042432
    %v226 = vsel %vm224, 4294967295, 65535
    %v227 = vsel %vm225, %v226, 0
    %v229 = vand.u32 %v184, %v227
    %v232 = vand.u32 %v185, %v227
    %v235 = vand.u32 %v186, %v227
    %v238 = vand.u32 %v187, %v227
    %v241 = vand.u32 %v188, %v227
    %v244 = vand.u32 %v189, %v227
    %v247 = vand.u32 %v190, %v227
    %v250 = vand.u32 %v191, %v227
    %v253 = vand.u32 %v192, %v227
    %v256 = vand.u32 %v193, %v227
    %v259 = vand.u32 %v194, %v227
    %v262 = vand.u32 %v195, %v227
    %264 = vmatprep.subr.bf16.mxu0 %v161
    %265 = vmatpush1.bf16.msra.mxu0 %v160
    %266 = vmatprep.subr.bf16.mxu0 %v173
    %267 = vmatpush1.bf16.msra.mxu0 %v172
    %268 = vmatprep.subr.bf16.mxu0 %v232
    %269 = vmatpush1.bf16.msra.mxu0 %v229
    %270 = vmatprep.subr.bf16.mxu0 0
    %271 = vmatpush1.bf16.msra.mxu0 0
    %272 = vmatprep.subr.bf16.mxu0 0
    %273 = vmatpush1.bf16.msra.mxu0 0
    %274 = vmatprep.subr.bf16.mxu0 0
    %275 = vmatpush1.bf16.msra.mxu0 0
    %276 = vmatprep.subr.bf16.mxu0 0
    %277 = vmatpush1.bf16.msra.mxu0 0
    %278 = vmatprep.subr.bf16.mxu0 0
    %279 = vmatpush1.bf16.msra.mxu0 0
    %280 = vmatprep.subr.bf16.mxu0 0
    %281 = vmatpush1.bf16.msra.mxu0 0
    %282 = vmatprep.subr.bf16.mxu0 0
    %283 = vmatpush1.bf16.msra.mxu0 0
    %284 = vmatprep.subr.bf16.mxu0 0
    %285 = vmatpush1.bf16.msra.mxu0 0
    %286 = vmatprep.subr.bf16.mxu0 0
    %287 = vmatpush1.bf16.msra.mxu0 0
    %288 = vmatprep.subr.bf16.mxu0 0
    %289 = vmatpush1.bf16.msra.mxu0 0
    %290 = vmatprep.subr.bf16.mxu0 0
    %291 = vmatpush1.bf16.msra.mxu0 0
    %292 = vmatprep.subr.bf16.mxu0 0
    %293 = vmatpush1.bf16.msra.mxu0 0
    %294 = vmatprep.subr.bf16.mxu0 0
    %295 = vmatpush1.bf16.msra.mxu0 0
    %296 = vmatprep.mubr.bf16.mxu0 0
    %297 = vmatmul.mubr.bf16.gmra.mrb[0].mxu0 %v222
    %v298 = vpop.f32.mrb[0].mxu0
    %v299 = vadd.f32 0.0, %v298
    %v300 = vpop.f32.mrb[0].mxu0
    %v301 = vadd.f32 0.0, %v300
    %v302 = vpop.f32.mrb[0].mxu0
    %v303 = vpop.f32.mrb[0].mxu0
    %304 = vdwg.mxu0
    %305 = vmatprep.subr.bf16.mxu0 %v163
    %306 = vmatpush1.bf16.msra.mxu0 %v162
    %307 = vmatprep.subr.bf16.mxu0 %v175
    %308 = vmatpush1.bf16.msra.mxu0 %v174
    %309 = vmatprep.subr.bf16.mxu0 %v238
    %310 = vmatpush1.bf16.msra.mxu0 %v235
    %311 = vmatprep.subr.bf16.mxu0 0
    %312 = vmatpush1.bf16.msra.mxu0 0
    %313 = vmatprep.subr.bf16.mxu0 0
    %314 = vmatpush1.bf16.msra.mxu0 0
    %315 = vmatprep.subr.bf16.mxu0 0
    %316 = vmatpush1.bf16.msra.mxu0 0
    %317 = vmatprep.subr.bf16.mxu0 0
    %318 = vmatpush1.bf16.msra.mxu0 0
    %319 = vmatprep.subr.bf16.mxu0 0
    %320 = vmatpush1.bf16.msra.mxu0 0
    %321 = vmatprep.subr.bf16.mxu0 0
    %322 = vmatpush1.bf16.msra.mxu0 0
    %323 = vmatprep.subr.bf16.mxu0 0
    %324 = vmatpush1.bf16.msra.mxu0 0
    %325 = vmatprep.subr.bf16.mxu0 0
    %326 = vmatpush1.bf16.msra.mxu0 0
    %327 = vmatprep.subr.bf16.mxu0 0
    %328 = vmatpush1.bf16.msra.mxu0 0
    %329 = vmatprep.subr.bf16.mxu0 0
    %330 = vmatpush1.bf16.msra.mxu0 0
    %331 = vmatprep.subr.bf16.mxu0 0
    %332 = vmatpush1.bf16.msra.mxu0 0
    %333 = vmatprep.subr.bf16.mxu0 0
    %334 = vmatpush1.bf16.msra.mxu0 0
    %335 = vmatprep.subr.bf16.mxu0 0
    %336 = vmatpush1.bf16.msra.mxu0 0
    %337 = vmatprep.mubr.bf16.mxu0 0
    %338 = vmatmul.mubr.bf16.gmra.mrb[0].mxu0 %v222
    %v339 = vpop.f32.mrb[0].mxu0
    %v340 = vadd.f32 0.0, %v339
    %v341 = vpop.f32.mrb[0].mxu0
    %v342 = vadd.f32 0.0, %v341
    %v343 = vpop.f32.mrb[0].mxu0
    %v344 = vpop.f32.mrb[0].mxu0
    %345 = vdwg.mxu0
    %346 = vmatprep.subr.bf16.mxu0 %v165
    %347 = vmatpush1.bf16.msra.mxu0 %v164
    %348 = vmatprep.subr.bf16.mxu0 %v177
    %349 = vmatpush1.bf16.msra.mxu0 %v176
    %350 = vmatprep.subr.bf16.mxu0 %v244
    %351 = vmatpush1.bf16.msra.mxu0 %v241
    %352 = vmatprep.subr.bf16.mxu0 0
    %353 = vmatpush1.bf16.msra.mxu0 0
    %354 = vmatprep.subr.bf16.mxu0 0
    %355 = vmatpush1.bf16.msra.mxu0 0
    %356 = vmatprep.subr.bf16.mxu0 0
    %357 = vmatpush1.bf16.msra.mxu0 0
    %358 = vmatprep.subr.bf16.mxu0 0
    %359 = vmatpush1.bf16.msra.mxu0 0
    %360 = vmatprep.subr.bf16.mxu0 0
    %361 = vmatpush1.bf16.msra.mxu0 0
    %362 = vmatprep.subr.bf16.mxu0 0
    %363 = vmatpush1.bf16.msra.mxu0 0
    %364 = vmatprep.subr.bf16.mxu0 0
    %365 = vmatpush1.bf16.msra.mxu0 0
    %366 = vmatprep.subr.bf16.mxu0 0
    %367 = vmatpush1.bf16.msra.mxu0 0
    %368 = vmatprep.subr.bf16.mxu0 0
    %369 = vmatpush1.bf16.msra.mxu0 0
    %370 = vmatprep.subr.bf16.mxu0 0
    %371 = vmatpush1.bf16.msra.mxu0 0
    %372 = vmatprep.subr.bf16.mxu0 0
    %373 = vmatpush1.bf16.msra.mxu0 0
    %374 = vmatprep.subr.bf16.mxu0 0
    %375 = vmatpush1.bf16.msra.mxu0 0
    %376 = vmatprep.subr.bf16.mxu0 0
    %377 = vmatpush1.bf16.msra.mxu0 0
    %378 = vmatprep.mubr.bf16.mxu0 0
    %379 = vmatmul.mubr.bf16.gmra.mrb[0].mxu0 %v222
    %v380 = vpop.f32.mrb[0].mxu0
    %v381 = vadd.f32 0.0, %v380
    %v382 = vpop.f32.mrb[0].mxu0
    %v383 = vadd.f32 0.0, %v382
    %v384 = vpop.f32.mrb[0].mxu0
    %v385 = vpop.f32.mrb[0].mxu0
    %386 = vdwg.mxu0
    %387 = vmatprep.subr.bf16.mxu0 %v167
    %388 = vmatpush1.bf16.msra.mxu0 %v166
    %389 = vmatprep.subr.bf16.mxu0 %v179
    %390 = vmatpush1.bf16.msra.mxu0 %v178
    %391 = vmatprep.subr.bf16.mxu0 %v250
    %392 = vmatpush1.bf16.msra.mxu0 %v247
    %393 = vmatprep.subr.bf16.mxu0 0
    %394 = vmatpush1.bf16.msra.mxu0 0
    %395 = vmatprep.subr.bf16.mxu0 0
    %396 = vmatpush1.bf16.msra.mxu0 0
    %397 = vmatprep.subr.bf16.mxu0 0
    %398 = vmatpush1.bf16.msra.mxu0 0
    %399 = vmatprep.subr.bf16.mxu0 0
    %400 = vmatpush1.bf16.msra.mxu0 0
    %401 = vmatprep.subr.bf16.mxu0 0
    %402 = vmatpush1.bf16.msra.mxu0 0
    %403 = vmatprep.subr.bf16.mxu0 0
    %404 = vmatpush1.bf16.msra.mxu0 0
    %405 = vmatprep.subr.bf16.mxu0 0
    %406 = vmatpush1.bf16.msra.mxu0 0
    %407 = vmatprep.subr.bf16.mxu0 0
    %408 = vmatpush1.bf16.msra.mxu0 0
    %409 = vmatprep.subr.bf16.mxu0 0
    %410 = vmatpush1.bf16.msra.mxu0 0
    %411 = vmatprep.subr.bf16.mxu0 0
    %412 = vmatpush1.bf16.msra.mxu0 0
    %413 = vmatprep.subr.bf16.mxu0 0
    %414 = vmatpush1.bf16.msra.mxu0 0
    %415 = vmatprep.subr.bf16.mxu0 0
    %416 = vmatpush1.bf16.msra.mxu0 0
    %417 = vmatprep.subr.bf16.mxu0 0
    %418 = vmatpush1.bf16.msra.mxu0 0
    %419 = vmatprep.mubr.bf16.mxu0 0
    %420 = vmatmul.mubr.bf16.gmra.mrb[0].mxu0 %v222
    %v421 = vpop.f32.mrb[0].mxu0
    %v422 = vadd.f32 0.0, %v421
    %v423 = vpop.f32.mrb[0].mxu0
    %v424 = vadd.f32 0.0, %v423
    %v425 = vpop.f32.mrb[0].mxu0
    %v426 = vpop.f32.mrb[0].mxu0
    %427 = vdwg.mxu0
    %428 = vmatprep.subr.bf16.mxu0 %v169
    %429 = vmatpush1.bf16.msra.mxu0 %v168
    %430 = vmatprep.subr.bf16.mxu0 %v181
    %431 = vmatpush1.bf16.msra.mxu0 %v180
    %432 = vmatprep.subr.bf16.mxu0 %v256
    %433 = vmatpush1.bf16.msra.mxu0 %v253
    %434 = vmatprep.subr.bf16.mxu0 0
    %435 = vmatpush1.bf16.msra.mxu0 0
    %436 = vmatprep.subr.bf16.mxu0 0
    %437 = vmatpush1.bf16.msra.mxu0 0
    %438 = vmatprep.subr.bf16.mxu0 0
    %439 = vmatpush1.bf16.msra.mxu0 0
    %440 = vmatprep.subr.bf16.mxu0 0
    %441 = vmatpush1.bf16.msra.mxu0 0
    %442 = vmatprep.subr.bf16.mxu0 0
    %443 = vmatpush1.bf16.msra.mxu0 0
    %444 = vmatprep.subr.bf16.mxu0 0
    %445 = vmatpush1.bf16.msra.mxu0 0
    %446 = vmatprep.subr.bf16.mxu0 0
    %447 = vmatpush1.bf16.msra.mxu0 0
    %448 = vmatprep.subr.bf16.mxu0 0
    %449 = vmatpush1.bf16.msra.mxu0 0
    %450 = vmatprep.subr.bf16.mxu0 0
    %451 = vmatpush1.bf16.msra.mxu0 0
    %452 = vmatprep.subr.bf16.mxu0 0
    %453 = vmatpush1.bf16.msra.mxu0 0
    %454 = vmatprep.subr.bf16.mxu0 0
    %455 = vmatpush1.bf16.msra.mxu0 0
    %456 = vmatprep.subr.bf16.mxu0 0
    %457 = vmatpush1.bf16.msra.mxu0 0
    %458 = vmatprep.subr.bf16.mxu0 0
    %459 = vmatpush1.bf16.msra.mxu0 0
    %460 = vmatprep.mubr.bf16.mxu0 0
    %461 = vmatmul.mubr.bf16.gmra.mrb[0].mxu0 %v222
    %v462 = vpop.f32.mrb[0].mxu0
    %v463 = vadd.f32 0.0, %v462
    %v464 = vpop.f32.mrb[0].mxu0
    %v465 = vadd.f32 0.0, %v464
    %v466 = vpop.f32.mrb[0].mxu0
    %v467 = vpop.f32.mrb[0].mxu0
    %468 = vdwg.mxu0
    %469 = vmatprep.subr.bf16.mxu0 %v171
    %470 = vmatpush1.bf16.msra.mxu0 %v170
    %471 = vmatprep.subr.bf16.mxu0 %v183
    %472 = vmatpush1.bf16.msra.mxu0 %v182
    %473 = vmatprep.subr.bf16.mxu0 %v262
    %474 = vmatpush1.bf16.msra.mxu0 %v259
    %475 = vmatprep.subr.bf16.mxu0 0
    %476 = vmatpush1.bf16.msra.mxu0 0
    %477 = vmatprep.subr.bf16.mxu0 0
    %478 = vmatpush1.bf16.msra.mxu0 0
    %479 = vmatprep.subr.bf16.mxu0 0
    %480 = vmatpush1.bf16.msra.mxu0 0
    %481 = vmatprep.subr.bf16.mxu0 0
    %482 = vmatpush1.bf16.msra.mxu0 0
    %483 = vmatprep.subr.bf16.mxu0 0
    %484 = vmatpush1.bf16.msra.mxu0 0
    %485 = vmatprep.subr.bf16.mxu0 0
    %486 = vmatpush1.bf16.msra.mxu0 0
    %487 = vmatprep.subr.bf16.mxu0 0
    %488 = vmatpush1.bf16.msra.mxu0 0
    %489 = vmatprep.subr.bf16.mxu0 0
    %490 = vmatpush1.bf16.msra.mxu0 0
    %491 = vmatprep.subr.bf16.mxu0 0
    %492 = vmatpush1.bf16.msra.mxu0 0
    %493 = vmatprep.subr.bf16.mxu0 0
    %494 = vmatpush1.bf16.msra.mxu0 0
    %495 = vmatprep.subr.bf16.mxu0 0
    %496 = vmatpush1.bf16.msra.mxu0 0
    %497 = vmatprep.subr.bf16.mxu0 0
    %498 = vmatpush1.bf16.msra.mxu0 0
    %499 = vmatprep.subr.bf16.mxu0 0
    %500 = vmatpush1.bf16.msra.mxu0 0
    %501 = vmatprep.mubr.bf16.mxu0 0
    %502 = vmatmul.mubr.bf16.gmra.mrb[0].mxu0 %v222
    %v503 = vpop.f32.mrb[0].mxu0
    %v504 = vadd.f32 0.0, %v503
    %v505 = vpop.f32.mrb[0].mxu0
    %v506 = vadd.f32 0.0, %v505
    %v507 = vpop.f32.mrb[0].mxu0
    %v508 = vpop.f32.mrb[0].mxu0
    %509 = vdwg.mxu0
    %510 = vst [vmem:[#allocation7] sm:$0xff] %v299
    %511 = vst [vmem:[#allocation7 + $0x8] sm:$0xff] %v301
    %512 = vst [vmem:[#allocation7 + $0x10] sm:$0xff] %v340
    %513 = vst [vmem:[#allocation7 + $0x18] sm:$0xff] %v342
    %514 = vst [vmem:[#allocation7 + $0x20] sm:$0xff] %v381
    %515 = vst [vmem:[#allocation7 + $0x28] sm:$0xff] %v383
    %516 = vst [vmem:[#allocation7 + $0x30] sm:$0xff] %v422
    %517 = vst [vmem:[#allocation7 + $0x38] sm:$0xff] %v424
    %518 = vst [vmem:[#allocation7 + $0x40] sm:$0xff] %v463
    %519 = vst [vmem:[#allocation7 + $0x48] sm:$0xff] %v465
    %520 = vst [vmem:[#allocation7 + $0x50] sm:$0xff] %v504
    %521 = vst [vmem:[#allocation7 + $0x58] sm:$0xff] %v506
    // Predicated region
    $region18: #{tpu_custom_call.1} parent=1 // pred_check
      _
    $region19: #{tpu_custom_call.1} parent=1 // pred_check_branch
      %523 = sbr.rel (0) target = $region21
    $region20: #{tpu_custom_call.1} parent=1 // pred_region
      %s525 = ssub.s32 1536, 1536
      %526 = vsyncadd [#allocation4], %s525
      %s528 = sshll.u32 [#allocation7], 4
      %s529 = int_to_ptr.vmem [resolvable:$true] %s528
      %531 = dma.vmem_to_hbm [thread:$0]  %s529, 1536, %s2, [#allocation4]
    $region21: #{tpu_custom_call.1} parent=1 // pred_fallthru
      _
    // Predicated region
    $region22: #{tpu_custom_call.1} parent=1 // pred_check
      _
    $region23: #{tpu_custom_call.1} parent=1 // pred_check_branch
      %533 = sbr.rel (0) target = $region25
    $region24: #{tpu_custom_call.1} parent=1 // pred_region
      %534 = dma.done [#allocation4], 1536
    $region25: #{tpu_custom_call.1} parent=1 // pred_fallthru
      _
    %535 = vsyncpa [#allocation3], 1
    %536 = vsyncpa [#allocation6], 1
    %537 = vsyncpa [#allocation4], 1

</llo_original>
